<compile_context>
chip_gen: v6e
topology: v6e:2x2x1
jax: 0.10.0
libtpu: 0.0.40
codegen_flags: <defaults>
</compile_context>

<pallas_src>
import jax
import jax.numpy as jnp
from jax.experimental import pallas as pl
from jax.experimental.pallas import tpu as pltpu

# ----- small, module-consistent shapes -----
N = 2                 # batch
C = 32                # n_feats
H = W = 16            # spatial
P = H * W             # pixels per image (lane dim, 256 = 2*128)
K = 3                 # kernel_size
DILATES = 4
CHALF = C // 2        # 16 (branch output channels)
C2 = 2 * C            # 64 (concat channels)
KD = DILATES * K * K * C   # 1152 = contraction dim of fused branch matmul
KS = K * K * C2            # 576  = contraction dim of shrink matmul
NEG_SLOPE = 0.2
RES_SCALE = 1.0


# ---------------------------------------------------------------------------
# pltpu.roll direction probe (defensive: makes the kernel correct under either
# rotation convention).  Returns `dir` such that
#   pltpu.roll(x, (dir * s) % n, axis=-1)[..., p] == x[..., (p + s) % n]
# Probe runs once on the same default TPU backend as the main kernel.
# ---------------------------------------------------------------------------
_ROLL_DIR = None


def _get_roll_dir():
    global _ROLL_DIR
    if _ROLL_DIR is None:
        def k(x_ref, o_ref):
            o_ref[...] = pltpu.roll(x_ref[...], 1, axis=1)

        x = jnp.tile(jnp.arange(128, dtype=jnp.float32)[None, :], (8, 1))
        y = pl.pallas_call(
            k, out_shape=jax.ShapeDtypeStruct((8, 128), jnp.float32))(x)
        v = int(jax.device_get(y)[0, 0])
        if v == 127:      # jnp.roll semantics: out[i] = x[i-1]
            _ROLL_DIR = -1
        elif v == 1:      # reversed semantics: out[i] = x[i+1]
            _ROLL_DIR = 1
        else:
            raise RuntimeError(f"unexpected pltpu.roll behaviour (probe={v})")
    return _ROLL_DIR


# ---------------------------------------------------------------------------
# Kernel
# ---------------------------------------------------------------------------
def _make_wab_kernel(roll_dir, ipb):
    """ipb = images folded into the lane dim of one grid step; L = ipb * P lanes."""
    L = ipb * P

    def kernel(x_ref, wd_ref, bd_ref, ws_ref, bs_ref, out_ref,
               col_d_ref, col_s_ref):
        # x_ref:   (C, L)    f32   activations, channels x (image-contiguous) pixels
        # wd_ref:  (2C, KD)  bf16  block-diagonal packed dilated weights
        # bd_ref:  (2C, 1)   f32   packed dilated biases
        # ws_ref:  (C, KS)   bf16  packed shrink weights
        # bs_ref:  (C, 1)    f32   shrink bias
        # out_ref: (C, L)    f32
        # col_d_ref: (KD, L) bf16  im2col scratch for the 4 dilated branches
        # col_s_ref: (KS, L) bf16  im2col scratch for the shrink conv

        # ---- cast activations to bf16 ONCE for the dilated im2col phase ----
        x_bf = x_ref[...].astype(jnp.bfloat16)                 # (C, L)

        # ---- tiny (1, L) lane iota -> per-(dh,dw) border masks, computed once ----
        lane = jax.lax.broadcasted_iota(jnp.int32, (1, L), 1)
        h_l = (lane // W) % H      # within-image row   (lane % P) // W
        w_l = lane % W             # within-image column

        mask_cache = {}

        def get_mask(dh, dw):
            key = (dh, dw)
            if key in mask_cache:
                return mask_cache[key]
            conds = []
            if dh > 0:
                conds.append(h_l < H - dh)
            elif dh < 0:
                conds.append(h_l >= -dh)
            if dw > 0:
                conds.append(w_l < W - dw)
            elif dw < 0:
                conds.append(w_l >= -dw)
            if not conds:
                m = None                                       # centre tap: no mask
            else:
                mb = conds[0]
                for cnd in conds[1:]:
                    mb = jnp.logical_and(mb, cnd)
                m = mb.astype(jnp.bfloat16)                    # {0,1} (1, L)
            mask_cache[key] = m
            return m

        def shifted(slab, dh, dw):
            """result[:, p] = slab[:, p + dh*W + dw] within the image, 0 outside."""
            s0 = dh * W + dw
            t = (roll_dir * s0) % L
            y = slab if t == 0 else pltpu.roll(slab, t, axis=1)
            m = get_mask(dh, dw)
            if m is not None:
                y = y * m                                      # one broadcast multiply
            return y

        # ---- im2col for the 4 dilated branches (rows fully overwritten) ----
        for i in range(DILATES):
            d = i + 1
            for kh in range(K):
                for kw in range(K):
                    j = i * K * K + kh * K + kw
                    col_d_ref[j * C:(j + 1) * C, :] = shifted(
                        x_bf, (kh - 1) * d, (kw - 1) * d)

        # ---- single fused matmul for all branches -> concatenated output ----
        cat = jnp.dot(wd_ref[...], col_d_ref[...],
                      preferred_element_type=jnp.float32)      # (2C, L) f32
        cat = cat + bd_ref[...]                                # bias
        cat = jnp.where(cat > 0, cat, NEG_SLOPE * cat)         # LeakyReLU(0.2)
        cat_bf = cat.astype(jnp.bfloat16)                      # cast once, (2C, L)

        # ---- im2col for the 3x3 shrink conv (zero pad via precomputed masks) ----
        for kh in range(K):
            for kw in range(K):
                j = kh * K + kw
                col_s_ref[j * C2:(j + 1) * C2, :] = shifted(cat_bf, kh - 1, kw - 1)

        # ---- shrink matmul, bias, residual (channel_attention = Identity) ----
        res = jnp.dot(ws_ref[...], col_s_ref[...],
                      preferred_element_type=jnp.float32)      # (C, L) f32
        res = res + bs_ref[...]
        if RES_SCALE != 1.0:                                   # skipped at trace time
            res = RES_SCALE * res
        # reload x here (f32 residual) instead of keeping it live across the kernel
        out_ref[...] = (res + x_ref[...]).astype(out_ref.dtype)

    return kernel


# ---------------------------------------------------------------------------
# Parameter packing (done once in the wrapper in plain JAX)
# ---------------------------------------------------------------------------
def _pack_params(wdil_list, bdil_list, wshr, bshr):
    # block-diagonal (2C, KD): branch i occupies rows [i*CHALF, (i+1)*CHALF) and
    # columns [i*K*K*C, (i+1)*K*K*C), with column order (kh, kw, cin).
    wd = jnp.zeros((C2, KD), jnp.float32)
    for i, wi in enumerate(wdil_list):                       # (CHALF, C, K, K)
        blk = jnp.transpose(wi, (0, 2, 3, 1)).reshape(CHALF, K * K * C)
        wd = wd.at[i * CHALF:(i + 1) * CHALF,
                   i * K * K * C:(i + 1) * K * K * C].set(blk)
    bd = jnp.concatenate(bdil_list, axis=0).reshape(C2, 1)
    ws = jnp.transpose(wshr, (0, 2, 3, 1)).reshape(C, KS)    # (C, 9*2C), (kh,kw,cin)
    bs = bshr.reshape(C, 1)
    return (wd.astype(jnp.bfloat16), bd.astype(jnp.float32),
            ws.astype(jnp.bfloat16), bs.astype(jnp.float32))


# ---------------------------------------------------------------------------
# Wrapper
# ---------------------------------------------------------------------------
def _images_per_block(n):
    # v7x has 2 TensorCores/chip: keep one image per grid step and shard via
    # dimension_semantics=("parallel",).  Single-TC v5e/v6e: fold the whole batch
    # into the lane dim (single grid step, 512-lane-dense vector ops).
    try:
        kind = jax.devices()[0].device_kind.lower()
    except Exception:
        kind = ""
    return 1 if "v7" in kind else n


def wab_block(x, wdil_list, bdil_list, wshr, bshr):
    """x: (N, C, H, W) float32 (NCHW, like PyTorch). Returns (N, C, H, W)."""
    n, c, h, w = x.shape
    assert (c, h, w) == (C, H, W)
    ipb = _images_per_block(n)
    assert n % ipb == 0
    L = ipb * P
    n_blocks = n // ipb

    kernel = _make_wab_kernel(_get_roll_dir(), ipb)
    wd, bd, ws, bs = _pack_params(wdil_list, bdil_list, wshr, bshr)

    # (N, C, H, W) -> (C, N*P): channels on sublanes, image-contiguous pixels on lanes.
    xp = jnp.transpose(x.reshape(n, C, P), (1, 0, 2)).reshape(C, n * P)

    out = pl.pallas_call(
        kernel,
        out_shape=jax.ShapeDtypeStruct((C, n * P), jnp.float32),
        grid_spec=pltpu.PrefetchScalarGridSpec(
            num_scalar_prefetch=0,
            grid=(n_blocks,),
            in_specs=[
                pl.BlockSpec((C, L), lambda b: (0, b)),
                pl.BlockSpec((C2, KD), lambda b: (0, 0)),
                pl.BlockSpec((C2, 1), lambda b: (0, 0)),
                pl.BlockSpec((C, KS), lambda b: (0, 0)),
                pl.BlockSpec((C, 1), lambda b: (0, 0)),
            ],
            out_specs=pl.BlockSpec((C, L), lambda b: (0, b)),
            scratch_shapes=[
                pltpu.VMEM((KD, L), jnp.bfloat16),   # branch im2col
                pltpu.VMEM((KS, L), jnp.bfloat16),   # shrink im2col
            ],
        ),
        compiler_params=pltpu.CompilerParams(
            dimension_semantics=("parallel",)),
    )(xp, wd, bd, ws, bs)

    return jnp.transpose(out.reshape(C, n, H, W), (1, 0, 2, 3))


# ---------------------------------------------------------------------------
# Pure-JAX reference (mirrors the PyTorch forward exactly, NCHW, f32)
# ---------------------------------------------------------------------------
def wab_reference(x, wdil_list, bdil_list, wshr, bshr):
    dn = ("NCHW", "OIHW", "NCHW")
    branches = []
    for i in range(DILATES):
        d = i + 1
        y = jax.lax.conv_general_dilated(
            x, wdil_list[i], window_strides=(1, 1),
            padding=[(d, d), (d, d)], rhs_dilation=(d, d),
            dimension_numbers=dn)
        y = y + bdil_list[i][None, :, None, None]
        y = jnp.where(y > 0, y, NEG_SLOPE * y)
        branches.append(y)
    cat = jnp.concatenate(branches, axis=1)
    s = jax.lax.conv_general_dilated(
        cat, wshr, window_strides=(1, 1), padding=[(1, 1), (1, 1)],
        dimension_numbers=dn)
    s = s + bshr[None, :, None, None]
    return RES_SCALE * s + x


if __name__ == "__main__":
    key = jax.random.PRNGKey(0)
    ks = jax.random.split(key, 2 * DILATES + 3)

    # Synthetic parameters with PyTorch Conv2d layouts (out, in, kh, kw).
    wdil_list = [0.05 * jax.random.normal(ks[i], (CHALF, C, K, K), jnp.float32)
                 for i in range(DILATES)]
    bdil_list = [0.05 * jax.random.normal(ks[DILATES + i], (CHALF,), jnp.float32)
                 for i in range(DILATES)]
    wshr = 0.02 * jax.random.normal(ks[-3], (C, C2, K, K), jnp.float32)
    bshr = 0.02 * jax.random.normal(ks[-2], (C,), jnp.float32)

    # Input in PyTorch NCHW layout.
    x = jax.random.normal(ks[-1], (N, C, H, W), jnp.float32)

    out = jax.block_until_ready(wab_block(x, wdil_list, bdil_list, wshr, bshr))
    ref = jax.block_until_ready(wab_reference(x, wdil_list, bdil_list, wshr, bshr))

    assert out.shape == (N, C, H, W)
    max_err = float(jnp.max(jnp.abs(out - ref)))
    # bf16 MXU operands with f32 accumulation -> loosened tolerance vs f32 reference.
    # (This N=2 comparison also validates that the batch-fold border masks zero every
    #  lane whose rolled source would cross an image boundary.)
    assert jnp.allclose(out, ref, rtol=3e-2, atol=3e-2), \
        f"Pallas output mismatch vs reference (max abs err {max_err:.3e})"
    print("KERNEL_OK")
</pallas_src>

<mosaic_0001>
module attributes {stable_mosaic.version = 11 : i64} {
  func.func @k(%arg0: memref<8x128xf32, #tpu.memory_space<vmem>>, %arg1: memref<8x128xf32, #tpu.memory_space<vmem>>) attributes {dimension_semantics = [], scalar_prefetch = 0 : i64, scratch_operands = 0 : i64, tpu.core_type = #tpu.core_type<tc>} {
    %c0 = arith.constant 0 : index
    %c0_0 = arith.constant 0 : index
    %0 = vector.load %arg0[%c0, %c0_0] : memref<8x128xf32, #tpu.memory_space<vmem>>, vector<8x128xf32>
    %c1_i32 = arith.constant 1 : i32
    %1 = tpu.dynamic_rotate %0 by %c1_i32 dim 1 : vector<8x128xf32>, i32 -> vector<8x128xf32>
    %c0_1 = arith.constant 0 : index
    %c0_2 = arith.constant 0 : index
    %2 = vector.load %arg1[%c0_1, %c0_2] : memref<8x128xf32, #tpu.memory_space<vmem>>, vector<8x128xf32>
    tpu.vector_store %arg1[%c0_1, %c0_2], %1 {strides = array<i32>} : memref<8x128xf32, #tpu.memory_space<vmem>>, vector<8x128xf32>,
    return
  }
}

</mosaic_0001>

<llo_original>
// kernel: tpu_custom_call.1
$region0: #{tpu_custom_call.1}
  #allocation0 [shape = 'u32[]', space=smem, size = 0x4, offset = 0x4, fixed_abs, tag = 'smem constant byte address 0x4 - core index']
  #allocation1 [shape = 'u32[144,128]{1,0:T(1,128)}', space=vmem, size = 0x12000, scoped, tag = 'internal scratch']
  %s0 = inlined_call_operand.hbm [shape: f32[8,128], index: 0, kind: input, shape index: {}]
  %s1 = inlined_call_operand.hbm [shape: f32[8,128], index: 1, kind: output, shape index: {}]
  %s2 = sld [smem:[#allocation0]]
  $region18: #{tpu_custom_call.1} parent=0
    _
  %s4 = ssub.s32 1, %s2
  %s5 = scalar_select 0, %s4, %s2
  $region1: #{tpu_custom_call.1} parent=0
    #allocation2 [shape = 'u8[4096]{0}', space=vmem, size = 0x1000, scoped, tag = 'input window, operand 0, single buffered']
    #allocation3 [shape = 's32[1]{0}', space=sflag, size = 0x4, scoped, tag = 'scoped memory for tpu_custom_call.1']
    #allocation4 [shape = 's32[1]{0}', space=sflag, size = 0x4, scoped, tag = 'scoped memory for tpu_custom_call.1']
    #allocation5 [shape = 'u8[4096]{0}', space=vmem, size = 0x1000, scoped, tag = 'output window, operand 0, single buffered']
    %6 = vsyncpa [#allocation3], 0
    %7 = vsyncpa [#allocation4], 0
    // Predicated region
    $region2: #{tpu_custom_call.1} parent=1 // pred_check
      _
    $region3: #{tpu_custom_call.1} parent=1 // pred_check_branch
      %9 = sbr.rel (0) target = $region5
    $region4: #{tpu_custom_call.1} parent=1 // pred_region
      %s11 = ssub.s32 128, 128
      %12 = vsyncadd [#allocation3], %s11
      %s14 = sshll.u32 [#allocation2], 4
      %s15 = int_to_ptr.vmem [resolvable:$true] %s14
      %17 = dma.hbm_to_vmem [thread:$0]  %s0, 128, %s15, [#allocation3]
    $region5: #{tpu_custom_call.1} parent=1 // pred_fallthru
      _
    // Predicated region
    $region6: #{tpu_custom_call.1} parent=1 // pred_check
      _
    $region7: #{tpu_custom_call.1} parent=1 // pred_check_branch
      %19 = sbr.rel (0) target = $region9
    $region8: #{tpu_custom_call.1} parent=1 // pred_region
      %20 = dma.done [#allocation3], 128
    $region9: #{tpu_custom_call.1} parent=1 // pred_fallthru
      _
    %v21 = vld [vmem:[#allocation2] sm:$0xff]
    %22 = vrot.lane.b32.xlu0 %v21, 1
    %v23 = vpop.permute.xlu0 %22
    %24 = vst [vmem:[#allocation5] sm:$0xff] %v23
    // Predicated region
    $region10: #{tpu_custom_call.1} parent=1 // pred_check
      _
    $region11: #{tpu_custom_call.1} parent=1 // pred_check_branch
      %26 = sbr.rel (0) target = $region13
    $region12: #{tpu_custom_call.1} parent=1 // pred_region
      %s28 = ssub.s32 128, 128
      %29 = vsyncadd [#allocation4], %s28
      %s31 = sshll.u32 [#allocation5], 4
      %s32 = int_to_ptr.vmem [resolvable:$true] %s31
      %34 = dma.vmem_to_hbm [thread:$0]  %s32, 128, %s1, [#allocation4]
    $region13: #{tpu_custom_call.1} parent=1 // pred_fallthru
      _
    // Predicated region
    $region14: #{tpu_custom_call.1} parent=1 // pred_check
      _
    $region15: #{tpu_custom_call.1} parent=1 // pred_check_branch
      %36 = sbr.rel (0) target = $region17
    $region16: #{tpu_custom_call.1} parent=1 // pred_region
      %37 = dma.done [#allocation4], 128
    $region17: #{tpu_custom_call.1} parent=1 // pred_fallthru
      _
    %38 = vsyncpa [#allocation3], 1
    %39 = vsyncpa [#allocation4], 1

</llo_original>
